<compile_context>
chip_gen: v5e
topology: v5e:2x2
jax: 0.10.0
libtpu: 0.0.40
codegen_flags: <defaults>
</compile_context>

<pallas_src>
import jax
import jax.numpy as jnp
from jax.experimental import pallas as pl
from jax.experimental.pallas import tpu as pltpu


# ----------------------------------------------------------------------------
# Fused kernel (built per num_layers; layer loop unrolls at trace time)
# ----------------------------------------------------------------------------
def _make_fused_mlp_kernel(num_layers, eps=1e-5):
    n_hidden = num_layers - 1

    def kernel(*refs):
        # refs layout: x, [wt_l, gamma_l, beta_l] * (num_layers-1), wt_last, b_last, out
        x_ref = refs[0]
        out_ref = refs[-1]

        h = x_ref[...]                                  # f32 (N, D0p), VMEM-resident
        idx = 1
        for _ in range(n_hidden):
            wt = refs[idx][...]                         # bf16 (Din_p, Hp)
            gamma = refs[idx + 1][...]                  # f32  (1, Hp)
            beta = refs[idx + 2][...]                   # f32  (1, Hp)
            idx += 3

            # bf16 MXU matmul, f32 accumulate. Bias omitted: cancels under BN mean.
            y = jnp.dot(h.astype(jnp.bfloat16), wt,
                        preferred_element_type=jnp.float32)

            # Single-pass BN training statistics over the (full) batch, in f32.
            inv_n = 1.0 / y.shape[0]
            mean = jnp.sum(y, axis=0, keepdims=True) * inv_n
            mean_sq = jnp.sum(y * y, axis=0, keepdims=True) * inv_n
            var = mean_sq - mean * mean
            inv_std = jax.lax.rsqrt(var + eps)

            # Fold gamma / beta into one scale/shift FMA, then ReLU.
            scale = gamma * inv_std
            shift = beta - mean * scale
            h = jnp.maximum(y * scale + shift, 0.0)

        wt = refs[idx][...]                             # bf16 (Hp or D0p, Doutp)
        b = refs[idx + 1][...]                          # f32  (1, Doutp)
        y = jnp.dot(h.astype(jnp.bfloat16), wt,
                    preferred_element_type=jnp.float32) + b
        out_ref[...] = y.astype(out_ref.dtype)          # lane-dense (padded) store

    return kernel


# ----------------------------------------------------------------------------
# Helpers
# ----------------------------------------------------------------------------
def _round_up(x, m):
    return ((x + m - 1) // m) * m


def _pad_to(a, shape):
    pads = [(0, t - s) for s, t in zip(a.shape, shape)]
    if all(p == (0, 0) for p in pads):
        return a
    return jnp.pad(a, pads)


def _full_spec(shape):
    # Whole-array block (grid=()), so the (8,128) divisibility rule does not apply.
    return pl.BlockSpec(shape, lambda *args: (0,) * len(shape))


# ----------------------------------------------------------------------------
# Parameter construction (PyTorch-style init; weights stored transposed, bf16)
# ----------------------------------------------------------------------------
def init_mlp_params(key, num_layers, input_dim, hidden_dim, output_dim):
    if num_layers < 1:
        raise ValueError("number of layers should be positive!")
    if num_layers == 1:
        dims = [(input_dim, output_dim)]
    else:
        dims = ([(input_dim, hidden_dim)]
                + [(hidden_dim, hidden_dim)] * (num_layers - 2)
                + [(hidden_dim, output_dim)])

    linears = []
    for din, dout in dims:
        key, kw, kb = jax.random.split(key, 3)
        bound = float(din) ** -0.5                      # U(-1/sqrt(fan_in), 1/sqrt(fan_in))
        wt = jax.random.uniform(kw, (din, dout), jnp.float32, -bound, bound)
        b = jax.random.uniform(kb, (1, dout), jnp.float32, -bound, bound)
        # Weights stored in bf16 (MXU compute dtype); biases stay f32.
        linears.append((wt.astype(jnp.bfloat16), b))

    bn = []
    if num_layers > 1:
        for _ in range(num_layers - 1):
            bn.append((jnp.ones((1, hidden_dim), jnp.float32),
                       jnp.zeros((1, hidden_dim), jnp.float32)))
    return {"num_layers": num_layers, "linears": linears, "bn": bn}


# ----------------------------------------------------------------------------
# Forward: one fused pallas_call for the whole MLP
# ----------------------------------------------------------------------------
def mlp_forward(params, x):
    num_layers = params["num_layers"]
    linears = params["linears"]
    bns = params["bn"]

    n, din = x.shape
    hidden = linears[0][0].shape[1] if num_layers > 1 else None
    dout = linears[-1][0].shape[1]

    d0p = _round_up(din, 128)
    hp = _round_up(hidden, 128) if num_layers > 1 else None
    doutp = _round_up(dout, 128)

    # Zero-pad feature dims to 128-lane multiples. Zero-padded weight rows/cols
    # keep padded channels identically zero through BN (var=0 path) and ReLU.
    inputs = [_pad_to(x.astype(jnp.float32), (n, d0p))]
    for l in range(num_layers - 1):
        wt, _b = linears[l]                             # hidden bias cancels under BN
        gamma, beta = bns[l]
        in_p = d0p if l == 0 else hp
        inputs.append(_pad_to(wt, (in_p, hp)))
        inputs.append(_pad_to(gamma, (1, hp)))
        inputs.append(_pad_to(beta, (1, hp)))
    wt_f, b_f = linears[-1]
    in_p = d0p if num_layers == 1 else hp
    inputs.append(_pad_to(wt_f, (in_p, doutp)))
    inputs.append(_pad_to(b_f, (1, doutp)))

    in_specs = [_full_spec(tuple(a.shape)) for a in inputs]

    # Cost estimate (real, unpadded work) for the XLA scheduler.
    flops = 0
    for wt, _b in linears:
        flops += 2 * n * wt.shape[0] * wt.shape[1]
    transcendentals = (num_layers - 1) * (hidden or 0)          # rsqrt per BN channel
    bytes_accessed = sum(int(a.size) * a.dtype.itemsize for a in inputs) + n * doutp * 4

    kernel = _make_fused_mlp_kernel(num_layers)
    out_pad = pl.pallas_call(
        kernel,
        out_shape=jax.ShapeDtypeStruct((n, doutp), jnp.float32),
        grid=(),
        in_specs=in_specs,
        out_specs=_full_spec((n, doutp)),
        compiler_params=pltpu.CompilerParams(vmem_limit_bytes=32 * 1024 * 1024),
        cost_estimate=pl.CostEstimate(flops=flops,
                                      transcendentals=transcendentals,
                                      bytes_accessed=bytes_accessed),
    )(*inputs)
    return out_pad[:, :dout]


# ----------------------------------------------------------------------------
# Pure-JAX reference (PyTorch-faithful formula: bias included, two-pass variance;
# same bf16 matmul precision as the kernel).
# ----------------------------------------------------------------------------
def mlp_forward_ref(params, x):
    num_layers = params["num_layers"]
    linears = params["linears"]
    bns = params["bn"]

    def _dot(a, w):
        return jnp.dot(a.astype(jnp.bfloat16), w, preferred_element_type=jnp.float32)

    if num_layers == 1:
        wt, b = linears[0]
        return _dot(x, wt) + b

    h = x
    for l in range(num_layers - 1):
        wt, b = linears[l]
        gamma, beta = bns[l]
        y = _dot(h, wt) + b
        mean = jnp.mean(y, axis=0, keepdims=True)
        var = jnp.mean((y - mean) ** 2, axis=0, keepdims=True)
        h = jnp.maximum(gamma * (y - mean) * jax.lax.rsqrt(var + 1e-5) + beta, 0.0)
    wt, b = linears[-1]
    return _dot(h, wt) + b


if __name__ == "__main__":
    key = jax.random.PRNGKey(0)
    key, kx = jax.random.split(key)

    # Multi-layer MLP: 3 layers, BN + ReLU on the two hidden layers.
    num_layers, input_dim, hidden_dim, output_dim, batch = 3, 16, 32, 4, 8
    x = jax.random.normal(kx, (batch, input_dim), jnp.float32)
    params = init_mlp_params(key, num_layers, input_dim, hidden_dim, output_dim)

    out = jax.block_until_ready(mlp_forward(params, x))
    ref = mlp_forward_ref(params, x)
    assert out.shape == (batch, output_dim)
    assert jnp.allclose(out, ref, atol=1e-3, rtol=1e-3), "multi-layer MLP mismatch"

    # Single-layer (pure linear) path.
    params1 = init_mlp_params(jax.random.PRNGKey(1), 1, input_dim, 1, output_dim)
    out1 = jax.block_until_ready(mlp_forward(params1, x))
    ref1 = mlp_forward_ref(params1, x)
    assert out1.shape == (batch, output_dim)
    assert jnp.allclose(out1, ref1, atol=1e-3, rtol=1e-3), "linear MLP mismatch"

    print("KERNEL_OK")
</pallas_src>

<mosaic_0001>
module attributes {stable_mosaic.version = 11 : i64} {
  func.func @kernel(%arg0: memref<8x128xf32, #tpu.memory_space<vmem>>, %arg1: memref<128x128xbf16, #tpu.memory_space<vmem>>, %arg2: memref<1x128xf32, #tpu.memory_space<vmem>>, %arg3: memref<1x128xf32, #tpu.memory_space<vmem>>, %arg4: memref<128x128xbf16, #tpu.memory_space<vmem>>, %arg5: memref<1x128xf32, #tpu.memory_space<vmem>>, %arg6: memref<1x128xf32, #tpu.memory_space<vmem>>, %arg7: memref<128x128xbf16, #tpu.memory_space<vmem>>, %arg8: memref<1x128xf32, #tpu.memory_space<vmem>>, %arg9: memref<8x128xf32, #tpu.memory_space<vmem>>) attributes {dimension_semantics = [], scalar_prefetch = 0 : i64, scratch_operands = 0 : i64, tpu.core_type = #tpu.core_type<tc>} {
    %c0 = arith.constant 0 : index
    %c0_0 = arith.constant 0 : index
    %0 = vector.load %arg0[%c0, %c0_0] : memref<8x128xf32, #tpu.memory_space<vmem>>, vector<8x128xf32>
    %c0_1 = arith.constant 0 : index
    %c0_2 = arith.constant 0 : index
    %1 = vector.load %arg1[%c0_1, %c0_2] : memref<128x128xbf16, #tpu.memory_space<vmem>>, vector<128x128xbf16>
    %c0_3 = arith.constant 0 : index
    %c0_4 = arith.constant 0 : index
    %2 = vector.load %arg2[%c0_3, %c0_4] : memref<1x128xf32, #tpu.memory_space<vmem>>, vector<1x128xf32>
    %c0_5 = arith.constant 0 : index
    %c0_6 = arith.constant 0 : index
    %3 = vector.load %arg3[%c0_5, %c0_6] : memref<1x128xf32, #tpu.memory_space<vmem>>, vector<1x128xf32>
    %4 = arith.truncf %0 : vector<8x128xf32> to vector<8x128xbf16>
    %cst = arith.constant dense<0.000000e+00> : vector<8x128xf32>
    %5 = tpu.matmul %4, %1, %cst {dimension_numbers = #tpu.dot_dimension_numbers<[1], [0], [0], [1], [0, 0, 1, 1], [], []>} : vector<8x128xbf16>, vector<128x128xbf16>, vector<8x128xf32> -> vector<8x128xf32>
    %cst_7 = arith.constant dense<0.000000e+00> : vector<128xf32>
    %6 = vector.multi_reduction <add>, %5, %cst_7 [0] : vector<8x128xf32> to vector<128xf32>
    %7 = vector.shape_cast %6 : vector<128xf32> to vector<1x128xf32>
    %cst_8 = arith.constant 1.250000e-01 : f32
    %8 = vector.broadcast %cst_8 : f32 to vector<1x128xf32>
    %9 = arith.mulf %7, %8 : vector<1x128xf32>
    %10 = arith.mulf %5, %5 : vector<8x128xf32>
    %cst_9 = arith.constant dense<0.000000e+00> : vector<128xf32>
    %11 = vector.multi_reduction <add>, %10, %cst_9 [0] : vector<8x128xf32> to vector<128xf32>
    %12 = vector.shape_cast %11 : vector<128xf32> to vector<1x128xf32>
    %cst_10 = arith.constant 1.250000e-01 : f32
    %13 = vector.broadcast %cst_10 : f32 to vector<1x128xf32>
    %14 = arith.mulf %12, %13 : vector<1x128xf32>
    %15 = arith.mulf %9, %9 : vector<1x128xf32>
    %16 = arith.subf %14, %15 : vector<1x128xf32>
    %cst_11 = arith.constant 9.99999974E-6 : f32
    %17 = vector.broadcast %cst_11 : f32 to vector<1x128xf32>
    %18 = arith.addf %16, %17 : vector<1x128xf32>
    %19 = math.rsqrt %18 : vector<1x128xf32>
    %20 = arith.mulf %2, %19 : vector<1x128xf32>
    %21 = arith.mulf %9, %20 : vector<1x128xf32>
    %22 = arith.subf %3, %21 : vector<1x128xf32>
    %23 = vector.broadcast %20 : vector<1x128xf32> to vector<8x128xf32>
    %24 = arith.mulf %5, %23 : vector<8x128xf32>
    %25 = vector.broadcast %22 : vector<1x128xf32> to vector<8x128xf32>
    %26 = arith.addf %24, %25 : vector<8x128xf32>
    %cst_12 = arith.constant 0.000000e+00 : f32
    %27 = vector.broadcast %cst_12 : f32 to vector<8x128xf32>
    %28 = arith.maximumf %26, %27 : vector<8x128xf32>
    %c0_13 = arith.constant 0 : index
    %c0_14 = arith.constant 0 : index
    %29 = vector.load %arg4[%c0_13, %c0_14] : memref<128x128xbf16, #tpu.memory_space<vmem>>, vector<128x128xbf16>
    %c0_15 = arith.constant 0 : index
    %c0_16 = arith.constant 0 : index
    %30 = vector.load %arg5[%c0_15, %c0_16] : memref<1x128xf32, #tpu.memory_space<vmem>>, vector<1x128xf32>
    %c0_17 = arith.constant 0 : index
    %c0_18 = arith.constant 0 : index
    %31 = vector.load %arg6[%c0_17, %c0_18] : memref<1x128xf32, #tpu.memory_space<vmem>>, vector<1x128xf32>
    %32 = arith.truncf %28 : vector<8x128xf32> to vector<8x128xbf16>
    %cst_19 = arith.constant dense<0.000000e+00> : vector<8x128xf32>
    %33 = tpu.matmul %32, %29, %cst_19 {dimension_numbers = #tpu.dot_dimension_numbers<[1], [0], [0], [1], [0, 0, 1, 1], [], []>} : vector<8x128xbf16>, vector<128x128xbf16>, vector<8x128xf32> -> vector<8x128xf32>
    %cst_20 = arith.constant dense<0.000000e+00> : vector<128xf32>
    %34 = vector.multi_reduction <add>, %33, %cst_20 [0] : vector<8x128xf32> to vector<128xf32>
    %35 = vector.shape_cast %34 : vector<128xf32> to vector<1x128xf32>
    %cst_21 = arith.constant 1.250000e-01 : f32
    %36 = vector.broadcast %cst_21 : f32 to vector<1x128xf32>
    %37 = arith.mulf %35, %36 : vector<1x128xf32>
    %38 = arith.mulf %33, %33 : vector<8x128xf32>
    %cst_22 = arith.constant dense<0.000000e+00> : vector<128xf32>
    %39 = vector.multi_reduction <add>, %38, %cst_22 [0] : vector<8x128xf32> to vector<128xf32>
    %40 = vector.shape_cast %39 : vector<128xf32> to vector<1x128xf32>
    %cst_23 = arith.constant 1.250000e-01 : f32
    %41 = vector.broadcast %cst_23 : f32 to vector<1x128xf32>
    %42 = arith.mulf %40, %41 : vector<1x128xf32>
    %43 = arith.mulf %37, %37 : vector<1x128xf32>
    %44 = arith.subf %42, %43 : vector<1x128xf32>
    %cst_24 = arith.constant 9.99999974E-6 : f32
    %45 = vector.broadcast %cst_24 : f32 to vector<1x128xf32>
    %46 = arith.addf %44, %45 : vector<1x128xf32>
    %47 = math.rsqrt %46 : vector<1x128xf32>
    %48 = arith.mulf %30, %47 : vector<1x128xf32>
    %49 = arith.mulf %37, %48 : vector<1x128xf32>
    %50 = arith.subf %31, %49 : vector<1x128xf32>
    %51 = vector.broadcast %48 : vector<1x128xf32> to vector<8x128xf32>
    %52 = arith.mulf %33, %51 : vector<8x128xf32>
    %53 = vector.broadcast %50 : vector<1x128xf32> to vector<8x128xf32>
    %54 = arith.addf %52, %53 : vector<8x128xf32>
    %cst_25 = arith.constant 0.000000e+00 : f32
    %55 = vector.broadcast %cst_25 : f32 to vector<8x128xf32>
    %56 = arith.maximumf %54, %55 : vector<8x128xf32>
    %c0_26 = arith.constant 0 : index
    %c0_27 = arith.constant 0 : index
    %57 = vector.load %arg7[%c0_26, %c0_27] : memref<128x128xbf16, #tpu.memory_space<vmem>>, vector<128x128xbf16>
    %c0_28 = arith.constant 0 : index
    %c0_29 = arith.constant 0 : index
    %58 = vector.load %arg8[%c0_28, %c0_29] : memref<1x128xf32, #tpu.memory_space<vmem>>, vector<1x128xf32>
    %59 = arith.truncf %56 : vector<8x128xf32> to vector<8x128xbf16>
    %cst_30 = arith.constant dense<0.000000e+00> : vector<8x128xf32>
    %60 = tpu.matmul %59, %57, %cst_30 {dimension_numbers = #tpu.dot_dimension_numbers<[1], [0], [0], [1], [0, 0, 1, 1], [], []>} : vector<8x128xbf16>, vector<128x128xbf16>, vector<8x128xf32> -> vector<8x128xf32>
    %61 = vector.broadcast %58 : vector<1x128xf32> to vector<8x128xf32>
    %62 = arith.addf %60, %61 : vector<8x128xf32>
    %c0_31 = arith.constant 0 : index
    %c0_32 = arith.constant 0 : index
    %63 = vector.load %arg9[%c0_31, %c0_32] : memref<8x128xf32, #tpu.memory_space<vmem>>, vector<8x128xf32>
    tpu.vector_store %arg9[%c0_31, %c0_32], %62 {strides = array<i32>} : memref<8x128xf32, #tpu.memory_space<vmem>>, vector<8x128xf32>,
    return
  }
}

</mosaic_0001>

<llo_original>
// kernel: tpu_custom_call.1
$region0: #{tpu_custom_call.1}
  #allocation0 [shape = 'u32[]', space=smem, size = 0x4, offset = 0x4, fixed_abs, tag = 'smem constant byte address 0x4 - core index']
  #allocation1 [shape = 'u32[72,128]{1,0:T(1,128)}', space=vmem, size = 0x9000, scoped, tag = 'internal scratch']
  %s0 = inlined_call_operand.hbm [shape: f32[8,128], index: 0, kind: input, shape index: {}]
  %s1 = inlined_call_operand.hbm [shape: bf16[128,128], index: 1, kind: input, shape index: {}]
  %s2 = inlined_call_operand.vmem [shape: f32[1,128], index: 2, kind: input, shape index: {}]
  %s3 = inlined_call_operand.vmem [shape: f32[1,128], index: 3, kind: input, shape index: {}]
  %s4 = inlined_call_operand.hbm [shape: bf16[128,128], index: 4, kind: input, shape index: {}]
  %s5 = inlined_call_operand.vmem [shape: f32[1,128], index: 5, kind: input, shape index: {}]
  %s6 = inlined_call_operand.vmem [shape: f32[1,128], index: 6, kind: input, shape index: {}]
  %s7 = inlined_call_operand.hbm [shape: bf16[128,128], index: 7, kind: input, shape index: {}]
  %s8 = inlined_call_operand.vmem [shape: f32[1,128], index: 8, kind: input, shape index: {}]
  %s9 = inlined_call_operand.hbm [shape: f32[8,128], index: 9, kind: output, shape index: {}]
  %s10 = sld [smem:[#allocation0]]
  $region62: #{tpu_custom_call.1} parent=0
    _
  %s12 = ssub.s32 1, %s10
  %s13 = scalar_select 0, %s12, %s10
  $region1: #{tpu_custom_call.1} parent=0
    #allocation2 [shape = 'u8[4096]{0}', space=vmem, size = 0x1000, scoped, tag = 'input window, operand 0, single buffered']
    #allocation3 [shape = 's32[1]{0}', space=sflag, size = 0x4, scoped, tag = 'scoped memory for tpu_custom_call.1']
    #allocation4 [shape = 's32[1]{0}', space=sflag, size = 0x4, scoped, tag = 'scoped memory for tpu_custom_call.1']
    #allocation5 [shape = 'u8[32768]{0}', space=vmem, size = 0x8000, scoped, tag = 'input window, operand 1, single buffered']
    #allocation6 [shape = 's32[1]{0}', space=sflag, size = 0x4, scoped, tag = 'scoped memory for tpu_custom_call.1']
    #allocation7 [shape = 'u8[32768]{0}', space=vmem, size = 0x8000, scoped, tag = 'input window, operand 4, single buffered']
    #allocation8 [shape = 'u8[32768]{0}', space=vmem, size = 0x8000, scoped, tag = 'input window, operand 7, single buffered']
    #allocation9 [shape = 's32[1]{0}', space=sflag, size = 0x4, scoped, tag = 'scoped memory for tpu_custom_call.1']
    #allocation10 [shape = 'u8[4096]{0}', space=vmem, size = 0x1000, scoped, tag = 'output window, operand 0, single buffered']
    %14 = vsyncpa [#allocation3], 0
    %15 = vsyncpa [#allocation6], 0
    %16 = vsyncpa [#allocation9], 0
    %17 = vsyncpa [#allocation4], 0
    // Predicated region
    $region2: #{tpu_custom_call.1} parent=1 // pred_check
      _
    $region3: #{tpu_custom_call.1} parent=1 // pred_check_branch
      %19 = sbr.rel (0) target = $region5
    $region4: #{tpu_custom_call.1} parent=1 // pred_region
      %21 = vsyncadd [#allocation3], 0
      %s23 = sshll.u32 %s0, 4
      %s24 = int_to_ptr.hbm [resolvable:$true] %s23
      %s25 = sshll.u32 [#allocation2], 4
      %s26 = int_to_ptr.vmem [resolvable:$true] %s25
      %28 = dma.hbm_to_vmem [thread:$0]  %s24, 128, %s26, [#allocation3]
    $region5: #{tpu_custom_call.1} parent=1 // pred_fallthru
      _
    // Predicated region
    $region6: #{tpu_custom_call.1} parent=1 // pred_check
      _
    $region7: #{tpu_custom_call.1} parent=1 // pred_check_branch
      %30 = sbr.rel (0) target = $region9
    $region8: #{tpu_custom_call.1} parent=1 // pred_region
      %32 = vsyncadd [#allocation6], 0
      %s33 = sshll.u32 %s1, 4
      %s34 = int_to_ptr.hbm [resolvable:$true] %s33
      %s35 = sshll.u32 [#allocation5], 4
      %s36 = int_to_ptr.vmem [resolvable:$true] %s35
      %41 = dma.hbm_to_vmem [thread:$0]  %s34, 1024, %s36, [#allocation6], 64, 64, 4
    $region9: #{tpu_custom_call.1} parent=1 // pred_fallthru
      _
    // Predicated region
    $region10: #{tpu_custom_call.1} parent=1 // pred_check
      _
    $region11: #{tpu_custom_call.1} parent=1 // pred_check_branch
      %43 = sbr.rel (0) target = $region13
    $region12: #{tpu_custom_call.1} parent=1 // pred_region
      _
    $region13: #{tpu_custom_call.1} parent=1 // pred_fallthru
      _
    // Predicated region
    $region14: #{tpu_custom_call.1} parent=1 // pred_check
      _
    $region15: #{tpu_custom_call.1} parent=1 // pred_check_branch
      %45 = sbr.rel (0) target = $region17
    $region16: #{tpu_custom_call.1} parent=1 // pred_region
      _
    $region17: #{tpu_custom_call.1} parent=1 // pred_fallthru
      _
    // Predicated region
    $region18: #{tpu_custom_call.1} parent=1 // pred_check
      _
    $region19: #{tpu_custom_call.1} parent=1 // pred_check_branch
      %47 = sbr.rel (0) target = $region21
    $region20: #{tpu_custom_call.1} parent=1 // pred_region
      %49 = vsyncadd [#allocation6], 0
      %s50 = sshll.u32 %s4, 4
      %s51 = int_to_ptr.hbm [resolvable:$true] %s50
      %s52 = sshll.u32 [#allocation7], 4
      %s53 = int_to_ptr.vmem [resolvable:$true] %s52
      %58 = dma.hbm_to_vmem [thread:$0]  %s51, 1024, %s53, [#allocation6], 64, 64, 4
    $region21: #{tpu_custom_call.1} parent=1 // pred_fallthru
      _
    // Predicated region
    $region22: #{tpu_custom_call.1} parent=1 // pred_check
      _
    $region23: #{tpu_custom_call.1} parent=1 // pred_check_branch
      %60 = sbr.rel (0) target = $region25
    $region24: #{tpu_custom_call.1} parent=1 // pred_region
      _
    $region25: #{tpu_custom_call.1} parent=1 // pred_fallthru
      _
    // Predicated region
    $region26: #{tpu_custom_call.1} parent=1 // pred_check
      _
    $region27: #{tpu_custom_call.1} parent=1 // pred_check_branch
      %62 = sbr.rel (0) target = $region29
    $region28: #{tpu_custom_call.1} parent=1 // pred_region
      _
    $region29: #{tpu_custom_call.1} parent=1 // pred_fallthru
      _
    // Predicated region
    $region30: #{tpu_custom_call.1} parent=1 // pred_check
      _
    $region31: #{tpu_custom_call.1} parent=1 // pred_check_branch
      %64 = sbr.rel (0) target = $region33
    $region32: #{tpu_custom_call.1} parent=1 // pred_region
      %66 = vsyncadd [#allocation9], 0
      %s67 = sshll.u32 %s7, 4
      %s68 = int_to_ptr.hbm [resolvable:$true] %s67
      %s69 = sshll.u32 [#allocation8], 4
      %s70 = int_to_ptr.vmem [resolvable:$true] %s69
      %75 = dma.hbm_to_vmem [thread:$0]  %s68, 1024, %s70, [#allocation9], 64, 64, 4
    $region33: #{tpu_custom_call.1} parent=1 // pred_fallthru
      _
    // Predicated region
    $region34: #{tpu_custom_call.1} parent=1 // pred_check
      _
    $region35: #{tpu_custom_call.1} parent=1 // pred_check_branch
      %77 = sbr.rel (0) target = $region37
    $region36: #{tpu_custom_call.1} parent=1 // pred_region
      _
    $region37: #{tpu_custom_call.1} parent=1 // pred_fallthru
      _
    // Predicated region
    $region38: #{tpu_custom_call.1} parent=1 // pred_check
      _
    $region39: #{tpu_custom_call.1} parent=1 // pred_check_branch
      %79 = sbr.rel (0) target = $region41
    $region40: #{tpu_custom_call.1} parent=1 // pred_region
      %81 = dma.done [#allocation3], 128
    $region41: #{tpu_custom_call.1} parent=1 // pred_fallthru
      _
    // Predicated region
    $region42: #{tpu_custom_call.1} parent=1 // pred_check
      _
    $region43: #{tpu_custom_call.1} parent=1 // pred_check_branch
      %83 = sbr.rel (0) target = $region45
    $region44: #{tpu_custom_call.1} parent=1 // pred_region
      %85 = dma.done [#allocation6], 1024
    $region45: #{tpu_custom_call.1} parent=1 // pred_fallthru
      _
    // Predicated region
    $region46: #{tpu_custom_call.1} parent=1 // pred_check
      _
    $region47: #{tpu_custom_call.1} parent=1 // pred_check_branch
      %87 = sbr.rel (0) target = $region49
    $region48: #{tpu_custom_call.1} parent=1 // pred_region
      %89 = dma.done [#allocation6], 1024
    $region49: #{tpu_custom_call.1} parent=1 // pred_fallthru
      _
    // Predicated region
    $region50: #{tpu_custom_call.1} parent=1 // pred_check
      _
    $region51: #{tpu_custom_call.1} parent=1 // pred_check_branch
      %91 = sbr.rel (0) target = $region53
    $region52: #{tpu_custom_call.1} parent=1 // pred_region
      %93 = dma.done [#allocation9], 1024
    $region53: #{tpu_custom_call.1} parent=1 // pred_fallthru
      _
    %v94 = vld [vmem:[#allocation2] sm:$0xff]
    %v95 = vld [vmem:[#allocation5] sm:$0xf]
    %v96 = vld [vmem:[#allocation5 + $0x4] sm:$0xf]
    %v97 = vld [vmem:[#allocation5 + $0x8] sm:$0xf]
    %v98 = vld [vmem:[#allocation5 + $0xc] sm:$0xf]
    %v99 = vld [vmem:[#allocation5 + $0x10] sm:$0xf]
    %v100 = vld [vmem:[#allocation5 + $0x14] sm:$0xf]
    %v101 = vld [vmem:[#allocation5 + $0x18] sm:$0xf]
    %v102 = vld [vmem:[#allocation5 + $0x1c] sm:$0xf]
    %v103 = vld [vmem:[#allocation5 + $0x20] sm:$0xf]
    %v104 = vld [vmem:[#allocation5 + $0x24] sm:$0xf]
    %v105 = vld [vmem:[#allocation5 + $0x28] sm:$0xf]
    %v106 = vld [vmem:[#allocation5 + $0x2c] sm:$0xf]
    %v107 = vld [vmem:[#allocation5 + $0x30] sm:$0xf]
    %v108 = vld [vmem:[#allocation5 + $0x34] sm:$0xf]
    %v109 = vld [vmem:[#allocation5 + $0x38] sm:$0xf]
    %v110 = vld [vmem:[#allocation5 + $0x3c] sm:$0xf]
    %v111 = vld [vmem:[%s2] sm:$0x1]
    %v112 = vld [vmem:[%s3] sm:$0x1]
    %v113 = vpack.c.bf16 %v94, %v94
    %v130 = vunpack.c.l.b16 %v95
    %v131 = vunpack.c.l.b16 %v96
    %v132 = vunpack.c.l.b16 %v97
    %v133 = vunpack.c.l.b16 %v98
    %v134 = vunpack.c.l.b16 %v99
    %v135 = vunpack.c.l.b16 %v100
    %v136 = vunpack.c.l.b16 %v101
    %v137 = vunpack.c.l.b16 %v102
    %v138 = vunpack.c.l.b16 %v103
    %v139 = vunpack.c.l.b16 %v104
    %v140 = vunpack.c.l.b16 %v105
    %v141 = vunpack.c.l.b16 %v106
    %v142 = vunpack.c.l.b16 %v107
    %v143 = vunpack.c.l.b16 %v108
    %v144 = vunpack.c.l.b16 %v109
    %v145 = vunpack.c.l.b16 %v110
    %v146 = vpack.c.b16 %v131, %v130
    %v147 = vpack.c.b16 %v133, %v132
    %v148 = vpack.c.b16 %v135, %v134
    %v149 = vpack.c.b16 %v137, %v136
    %v150 = vpack.c.b16 %v139, %v138
    %v151 = vpack.c.b16 %v141, %v140
    %v152 = vpack.c.b16 %v143, %v142
    %v153 = vpack.c.b16 %v145, %v144
    %162 = vmatpush.bf16.msra.mxu0 %v153
    %163 = vmatpush.bf16.msra.mxu0 %v152
    %164 = vmatpush.bf16.msra.mxu0 %v151
    %165 = vmatpush.bf16.msra.mxu0 %v150
    %166 = vmatpush.bf16.msra.mxu0 %v149
    %167 = vmatpush.bf16.msra.mxu0 %v148
    %168 = vmatpush.bf16.msra.mxu0 %v147
    %169 = vmatpush.bf16.msra.mxu0 %v146
    %170 = vmatmul.bf16.gmra.mxu0 %v113
    %v171 = vpop.f32.mrf.mxu0
    %v172 = vadd.f32 0.0, %v171
    %v173 = vpop.f32.mrf.mxu0
    %174 = vdwg.mxu0
    %v175 = vrot.slane %v172, 4
    %v176 = vadd.f32 %v172, %v175
    %v177 = vrot.slane %v176, 2
    %v178 = vadd.f32 %v176, %v177
    %v179 = vrot.slane %v178, 1
    %v180 = vadd.f32 %v178, %v179
    %v181 = vmul.f32 %v180, 0.125
    %v182 = vmul.f32 %v172, %v172
    %v183 = vrot.slane %v182, 4
    %v184 = vadd.f32 %v182, %v183
    %v185 = vrot.slane %v184, 2
    %v186 = vadd.f32 %v184, %v185
    %v187 = vrot.slane %v186, 1
    %v188 = vadd.f32 %v186, %v187
    %v189 = vmul.f32 %v188, 0.125
    %v190 = vmul.f32 %v181, %v181
    %v191 = vsub.f32 %v189, %v190
    %v192 = vadd.f32 %v191, 1e-05
    %v193 = vrsqrt.pop %v192
    %v194 = vmul.f32 %v193, %v192
    %v195 = vmul.f32 %v194, %v193
    %v196 = vmul.f32 0.5, %v195
    %v197 = vsub.f32 1.5, %v196
    %v198 = vmul.f32 %v193, %v197
    %vm199 = vweird.f32 %v192
    %vm200 = vweird.f32 %v193
    %vm201 = vmor %vm199, %vm200
    %v202 = vsel %vm201, %v193, %v198
    %v203 = vmul.f32 %v111, %v202
    %v204 = vmul.f32 %v181, %v203
    %v205 = vsub.f32 %v112, %v204
    %v207 = vperm.slane %v203, 0
    %v209 = vmul.f32 %v172, %v207
    %v211 = vperm.slane %v205, 0
    %v213 = vadd.f32 %v209, %v211
    %v214 = vmax.f32 %v213, 0.0
    %v215 = vld [vmem:[#allocation7] sm:$0xf]
    %v216 = vld [vmem:[#allocation7 + $0x4] sm:$0xf]
    %v217 = vld [vmem:[#allocation7 + $0x8] sm:$0xf]
    %v218 = vld [vmem:[#allocation7 + $0xc] sm:$0xf]
    %v219 = vld [vmem:[#allocation7 + $0x10] sm:$0xf]
    %v220 = vld [vmem:[#allocation7 + $0x14] sm:$0xf]
    %v221 = vld [vmem:[#allocation7 + $0x18] sm:$0xf]
    %v222 = vld [vmem:[#allocation7 + $0x1c] sm:$0xf]
    %v223 = vld [vmem:[#allocation7 + $0x20] sm:$0xf]
    %v224 = vld [vmem:[#allocation7 + $0x24] sm:$0xf]
    %v225 = vld [vmem:[#allocation7 + $0x28] sm:$0xf]
    %v226 = vld [vmem:[#allocation7 + $0x2c] sm:$0xf]
    %v227 = vld [vmem:[#allocation7 + $0x30] sm:$0xf]
    %v228 = vld [vmem:[#allocation7 + $0x34] sm:$0xf]
    %v229 = vld [vmem:[#allocation7 + $0x38] sm:$0xf]
    %v230 = vld [vmem:[#allocation7 + $0x3c] sm:$0xf]
    %v231 = vld [vmem:[%s5] sm:$0x1]
    %v232 = vld [vmem:[%s6] sm:$0x1]
    %v233 = vpack.c.bf16 %v214, %v214
    %v250 = vunpack.c.l.b16 %v215
    %v251 = vunpack.c.l.b16 %v216
    %v252 = vunpack.c.l.b16 %v217
    %v253 = vunpack.c.l.b16 %v218
    %v254 = vunpack.c.l.b16 %v219
    %v255 = vunpack.c.l.b16 %v220
    %v256 = vunpack.c.l.b16 %v221
    %v257 = vunpack.c.l.b16 %v222
    %v258 = vunpack.c.l.b16 %v223
    %v259 = vunpack.c.l.b16 %v224
    %v260 = vunpack.c.l.b16 %v225
    %v261 = vunpack.c.l.b16 %v226
    %v262 = vunpack.c.l.b16 %v227
    %v263 = vunpack.c.l.b16 %v228
    %v264 = vunpack.c.l.b16 %v229
    %v265 = vunpack.c.l.b16 %v230
    %v266 = vpack.c.b16 %v251, %v250
    %v267 = vpack.c.b16 %v253, %v252
    %v268 = vpack.c.b16 %v255, %v254
    %v269 = vpack.c.b16 %v257, %v256
    %v270 = vpack.c.b16 %v259, %v258
    %v271 = vpack.c.b16 %v261, %v260
    %v272 = vpack.c.b16 %v263, %v262
    %v273 = vpack.c.b16 %v265, %v264
    %282 = vmatpush.bf16.msra.mxu0 %v273
    %283 = vmatpush.bf16.msra.mxu0 %v272
    %284 = vmatpush.bf16.msra.mxu0 %v271
    %285 = vmatpush.bf16.msra.mxu0 %v270
    %286 = vmatpush.bf16.msra.mxu0 %v269
    %287 = vmatpush.bf16.msra.mxu0 %v268
    %288 = vmatpush.bf16.msra.mxu0 %v267
    %289 = vmatpush.bf16.msra.mxu0 %v266
    %290 = vmatmul.bf16.gmra.mxu0 %v233
    %v291 = vpop.f32.mrf.mxu0
    %v292 = vadd.f32 0.0, %v291
    %v293 = vpop.f32.mrf.mxu0
    %294 = vdwg.mxu0
    %v295 = vrot.slane %v292, 4
    %v296 = vadd.f32 %v292, %v295
    %v297 = vrot.slane %v296, 2
    %v298 = vadd.f32 %v296, %v297
    %v299 = vrot.slane %v298, 1
    %v300 = vadd.f32 %v298, %v299
    %v301 = vmul.f32 %v300, 0.125
    %v302 = vmul.f32 %v292, %v292
    %v303 = vrot.slane %v302, 4
    %v304 = vadd.f32 %v302, %v303
    %v305 = vrot.slane %v304, 2
    %v306 = vadd.f32 %v304, %v305
    %v307 = vrot.slane %v306, 1
    %v308 = vadd.f32 %v306, %v307
    %v309 = vmul.f32 %v308, 0.125
    %v310 = vmul.f32 %v301, %v301
    %v311 = vsub.f32 %v309, %v310
    %v312 = vadd.f32 %v311, 1e-05
    %v313 = vrsqrt.pop %v312
    %v314 = vmul.f32 %v313, %v312
    %v315 = vmul.f32 %v314, %v313
    %v316 = vmul.f32 0.5, %v315
    %v317 = vsub.f32 1.5, %v316
    %v318 = vmul.f32 %v313, %v317
    %vm319 = vweird.f32 %v312
    %vm320 = vweird.f32 %v313
    %vm321 = vmor %vm319, %vm320
    %v322 = vsel %vm321, %v313, %v318
    %v323 = vmul.f32 %v231, %v322
    %v324 = vmul.f32 %v301, %v323
    %v325 = vsub.f32 %v232, %v324
    %v327 = vperm.slane %v323, 0
    %v329 = vmul.f32 %v292, %v327
    %v331 = vperm.slane %v325, 0
    %v333 = vadd.f32 %v329, %v331
    %v334 = vmax.f32 %v333, 0.0
    %v335 = vld [vmem:[#allocation8] sm:$0xf]
    %v336 = vld [vmem:[#allocation8 + $0x4] sm:$0xf]
    %v337 = vld [vmem:[#allocation8 + $0x8] sm:$0xf]
    %v338 = vld [vmem:[#allocation8 + $0xc] sm:$0xf]
    %v339 = vld [vmem:[#allocation8 + $0x10] sm:$0xf]
    %v340 = vld [vmem:[#allocation8 + $0x14] sm:$0xf]
    %v341 = vld [vmem:[#allocation8 + $0x18] sm:$0xf]
    %v342 = vld [vmem:[#allocation8 + $0x1c] sm:$0xf]
    %v343 = vld [vmem:[#allocation8 + $0x20] sm:$0xf]
    %v344 = vld [vmem:[#allocation8 + $0x24] sm:$0xf]
    %v345 = vld [vmem:[#allocation8 + $0x28] sm:$0xf]
    %v346 = vld [vmem:[#allocation8 + $0x2c] sm:$0xf]
    %v347 = vld [vmem:[#allocation8 + $0x30] sm:$0xf]
    %v348 = vld [vmem:[#allocation8 + $0x34] sm:$0xf]
    %v349 = vld [vmem:[#allocation8 + $0x38] sm:$0xf]
    %v350 = vld [vmem:[#allocation8 + $0x3c] sm:$0xf]
    %v351 = vld [vmem:[%s8] sm:$0x1]
    %v352 = vpack.c.bf16 %v334, %v334
    %v354 = vperm.slane %v351, 0
    %v372 = vunpack.c.l.b16 %v335
    %v373 = vunpack.c.l.b16 %v336
    %v374 = vunpack.c.l.b16 %v337
    %v375 = vunpack.c.l.b16 %v338
    %v376 = vunpack.c.l.b16 %v339
    %v377 = vunpack.c.l.b16 %v340
    %v378 = vunpack.c.l.b16 %v341
    %v379 = vunpack.c.l.b16 %v342
    %v380 = vunpack.c.l.b16 %v343
    %v381 = vunpack.c.l.b16 %v344
    %v382 = vunpack.c.l.b16 %v345
    %v383 = vunpack.c.l.b16 %v346
    %v384 = vunpack.c.l.b16 %v347
    %v385 = vunpack.c.l.b16 %v348
    %v386 = vunpack.c.l.b16 %v349
    %v387 = vunpack.c.l.b16 %v350
    %v388 = vpack.c.b16 %v373, %v372
    %v389 = vpack.c.b16 %v375, %v374
    %v390 = vpack.c.b16 %v377, %v376
    %v391 = vpack.c.b16 %v379, %v378
    %v392 = vpack.c.b16 %v381, %v380
    %v393 = vpack.c.b16 %v383, %v382
    %v394 = vpack.c.b16 %v385, %v384
    %v395 = vpack.c.b16 %v387, %v386
    %404 = vmatpush.bf16.msra.mxu0 %v395
    %405 = vmatpush.bf16.msra.mxu0 %v394
    %406 = vmatpush.bf16.msra.mxu0 %v393
    %407 = vmatpush.bf16.msra.mxu0 %v392
    %408 = vmatpush.bf16.msra.mxu0 %v391
    %409 = vmatpush.bf16.msra.mxu0 %v390
    %410 = vmatpush.bf16.msra.mxu0 %v389
    %411 = vmatpush.bf16.msra.mxu0 %v388
    %412 = vmatmul.bf16.gmra.mxu0 %v352
    %v413 = vpop.f32.mrf.mxu0
    %v414 = vadd.f32 %v354, %v413
    %v415 = vpop.f32.mrf.mxu0
    %416 = vdwg.mxu0
    %417 = vst [vmem:[#allocation10] sm:$0xff] %v414
    // Predicated region
    $region54: #{tpu_custom_call.1} parent=1 // pred_check
      _
    $region55: #{tpu_custom_call.1} parent=1 // pred_check_branch
      %419 = sbr.rel (0) target = $region57
    $region56: #{tpu_custom_call.1} parent=1 // pred_region
      %421 = vsyncadd [#allocation4], 0
      %s423 = sshll.u32 [#allocation10], 4
      %s424 = int_to_ptr.vmem [resolvable:$true] %s423
      %s425 = sshll.u32 %s9, 4
      %s426 = int_to_ptr.hbm [resolvable:$true] %s425
      %428 = dma.vmem_to_hbm [thread:$0]  %s424, 128, %s426, [#allocation4]
    $region57: #{tpu_custom_call.1} parent=1 // pred_fallthru
      _
    // Predicated region
    $region58: #{tpu_custom_call.1} parent=1 // pred_check
      _
    $region59: #{tpu_custom_call.1} parent=1 // pred_check_branch
      %430 = sbr.rel (0) target = $region61
    $region60: #{tpu_custom_call.1} parent=1 // pred_region
      %432 = dma.done [#allocation4], 128
    $region61: #{tpu_custom_call.1} parent=1 // pred_fallthru
      _
    %433 = vsyncpa [#allocation3], 1
    %434 = vsyncpa [#allocation6], 1
    %435 = vsyncpa [#allocation9], 1
    %436 = vsyncpa [#allocation4], 1

</llo_original>
